<compile_context>
chip_gen: v7x
topology: tpu7x:2x2x1
jax: 0.10.0
libtpu: 0.0.40
codegen_flags: <defaults>
</compile_context>

<pallas_src>
import functools

import jax
import jax.numpy as jnp
from jax.experimental import pallas as pl
from jax.experimental.pallas import tpu as pltpu

LANE = 128      # vreg lane width
SUBLANE = 8     # f32 sublane count


def _round_up(d, m):
    return ((d + m - 1) // m) * m


# -----------------------------------------------------------------------------
# Single fused kernel: conv1 -> relu -> conv2 -> relu -> gap -> lin1 -> relu
#                      -> lin2 -> relu -> lin3 -> log_softmax
# -----------------------------------------------------------------------------
def _fused_rgcn_kernel(x_ref, a_ref, pool_ref,
                       w1_ref, b1_ref, w2_ref, b2_ref,
                       l1w_ref, l1b_ref, l2w_ref, l2b_ref, l3w_ref, l3b_ref,
                       o_ref, *, num_parts):
    npad = a_ref.shape[1]
    a_b = a_ref[...]          # bf16 [(R+1)*npad, npad]; identity block first

    def rgcn_layer(h, w_ref, b_ref):
        # ONE MXU push computes the root pass-through and every relation's
        # aggregation: [I; A_0; ...; A_{R-1}] @ h, f32 accumulation.
        ah = jnp.dot(a_b, h.astype(jnp.bfloat16),
                     preferred_element_type=jnp.float32)      # [(R+1)*npad, F]
        # Re-pack the (R+1) sublane row-blocks as a lane concat so the weight
        # contraction runs at the REAL K=(R+1)*F (64 / 128), not 512.
        cat = jnp.concatenate(
            [ah[r * npad:(r + 1) * npad, :] for r in range(num_parts)],
            axis=-1)                                          # [npad, (R+1)*F]
        z = jnp.dot(cat.astype(jnp.bfloat16), w_ref[...],
                    preferred_element_type=jnp.float32)       # [npad, nhid]
        # Bias + ReLU stay in f32 on the VPU (v5e has no bf16 VALU/EUP).
        return jnp.maximum(z + b_ref[...], 0.0)

    h1 = rgcn_layer(x_ref[...], w1_ref, b1_ref)
    h2 = rgcn_layer(h1, w2_ref, b2_ref)

    # Global mean pool: pool rows beyond the real graph count are zero.
    pooled = jnp.dot(pool_ref[...], h2.astype(jnp.bfloat16),
                     preferred_element_type=jnp.float32)      # [gpad, nhid]

    z1 = jnp.maximum(
        jnp.dot(pooled.astype(jnp.bfloat16), l1w_ref[...],
                preferred_element_type=jnp.float32) + l1b_ref[...], 0.0)
    # F.dropout(training=False) is the identity (eval-mode forward).
    z2 = jnp.maximum(
        jnp.dot(z1.astype(jnp.bfloat16), l2w_ref[...],
                preferred_element_type=jnp.float32) + l2b_ref[...], 0.0)
    logits = (jnp.dot(z2.astype(jnp.bfloat16), l3w_ref[...],
                      preferred_element_type=jnp.float32) + l3b_ref[...])

    # Padded logit lanes carry a -1e9 bias -> exp(..) == 0 in f32. Rows past
    # num_graphs compute garbage log-probs and are sliced off by the caller.
    m = jnp.max(logits, axis=-1, keepdims=True)
    shifted = logits - m
    lse = jnp.log(jnp.sum(jnp.exp(shifted), axis=-1, keepdims=True))
    o_ref[...] = (shifted - lse).astype(o_ref.dtype)


# -----------------------------------------------------------------------------
# Weight packing (plain JAX, done ONCE — hoisted out of the per-call path)
# -----------------------------------------------------------------------------
def prepare_params(params, num_relations):
    """Row-stack the per-relation conv weights behind the root weight at their
    real feature width, cast MXU operands to bf16, keep biases (VPU adds) in
    f32, and pad only the logit lanes to 128 with a -1e9 bias sentinel."""
    bf = jnp.bfloat16
    ncls = params["lin3_w"].shape[1]
    cp = _round_up(ncls, LANE)

    # Order must match the in-kernel A_stack = [I; A_0; ...; A_{R-1}].
    w1 = jnp.concatenate(
        [params["conv1_root"]]
        + [params["conv1_w"][r] for r in range(num_relations)],
        axis=0).astype(bf)                                   # [(R+1)*fin, nhid]
    w2 = jnp.concatenate(
        [params["conv2_root"]]
        + [params["conv2_w"][r] for r in range(num_relations)],
        axis=0).astype(bf)                                   # [(R+1)*nhid, nhid]
    b1 = params["conv1_b"].reshape(1, -1).astype(jnp.float32)
    b2 = params["conv2_b"].reshape(1, -1).astype(jnp.float32)

    l1w = params["lin1_w"].astype(bf)
    l1b = params["lin1_b"].reshape(1, -1).astype(jnp.float32)
    l2w = params["lin2_w"].astype(bf)
    l2b = params["lin2_b"].reshape(1, -1).astype(jnp.float32)
    l3w = jnp.pad(params["lin3_w"], ((0, 0), (0, cp - ncls))).astype(bf)
    l3b = jnp.pad(params["lin3_b"], (0, cp - ncls),
                  constant_values=-1e9).reshape(1, cp).astype(jnp.float32)
    return (w1, b1, w2, b2, l1w, l1b, l2w, l2b, l3w, l3b)


# -----------------------------------------------------------------------------
# Plain-JAX glue: dense adjacency / pooling matrix (fused under the same jit)
# -----------------------------------------------------------------------------
def build_adj(edge_index, edge_type, num_nodes, num_relations):
    src, dst = edge_index[0], edge_index[1]
    adj = jnp.zeros((num_relations, num_nodes, num_nodes), jnp.float32)
    adj = adj.at[edge_type, dst, src].add(1.0)
    deg = adj.sum(axis=-1, keepdims=True)          # per-relation in-degree
    return adj / jnp.maximum(deg, 1.0)             # mean aggregation


def build_pool(batch, num_nodes, num_graphs):
    onehot = (batch[None, :] == jnp.arange(num_graphs)[:, None]).astype(jnp.float32)
    counts = onehot.sum(axis=1, keepdims=True)
    return onehot / jnp.maximum(counts, 1.0)       # global mean pool (gap)


# -----------------------------------------------------------------------------
# Forward: everything (glue + fused kernel) under one jit
# -----------------------------------------------------------------------------
@functools.partial(jax.jit,
                   static_argnames=("num_relations", "num_graphs", "num_classes"))
def rgcn_forward(packed, x, edge_index, edge_attr, batch, *,
                 num_relations, num_graphs, num_classes):
    w1, b1, w2, b2, l1w, l1b, l2w, l2b, l3w, l3b = packed
    bf = jnp.bfloat16
    n, fin = x.shape
    nhid = w1.shape[1]
    nhid2 = l2w.shape[1]
    cp = l3w.shape[1]
    nparts = num_relations + 1

    # edge_attr is not None -> edge_type = argmax over the attribute dim.
    edge_type = jnp.argmax(edge_attr, axis=1)
    adj = build_adj(edge_index, edge_type, n, num_relations)     # [R, n, n]
    pool = build_pool(batch, n, num_graphs)                      # [G, n]

    npad = _round_up(n, SUBLANE)
    gpad = _round_up(num_graphs, SUBLANE)

    # [I; A_0; ...; A_{R-1}] on the sublane axis -> one in-kernel dot does all
    # relation aggregations and the root pass-through.
    eye = jnp.eye(npad, dtype=jnp.float32)
    adj_p = jnp.pad(adj, ((0, 0), (0, npad - n), (0, npad - n)))
    a_stack = jnp.concatenate([eye[None], adj_p], axis=0)
    a_stack = a_stack.reshape(nparts * npad, npad).astype(bf)

    x_p = jnp.pad(x, ((0, npad - n), (0, 0))).astype(bf)
    pool_p = jnp.pad(pool, ((0, gpad - num_graphs), (0, npad - n))).astype(bf)

    operands = (x_p, a_stack, pool_p, w1, b1, w2, b2,
                l1w, l1b, l2w, l2b, l3w, l3b)

    flops = 2 * (nparts * npad * npad * fin + npad * nparts * fin * nhid     # conv1
                 + nparts * npad * npad * nhid + npad * nparts * nhid * nhid # conv2
                 + gpad * npad * nhid                                        # pool
                 + gpad * nhid * nhid + gpad * nhid * nhid2 + gpad * nhid2 * cp)
    bytes_accessed = (sum(int(o.size) * o.dtype.itemsize for o in operands)
                      + gpad * cp * 4)
    cost = pl.CostEstimate(flops=flops, transcendentals=2 * gpad * cp,
                           bytes_accessed=bytes_accessed)

    vmem_spec = pl.BlockSpec(memory_space=pltpu.MemorySpace.VMEM)
    out_p = pl.pallas_call(
        functools.partial(_fused_rgcn_kernel, num_parts=nparts),
        out_shape=jax.ShapeDtypeStruct((gpad, cp), jnp.float32),
        in_specs=[vmem_spec] * len(operands),
        out_specs=vmem_spec,
        compiler_params=pltpu.CompilerParams(vmem_limit_bytes=32 * 1024 * 1024),
        cost_estimate=cost,
    )(*operands)
    return out_p[:num_graphs, :num_classes]


# -----------------------------------------------------------------------------
# Pure-JAX references (f32 semantics, and one mirroring the kernel's bf16 MXU)
# -----------------------------------------------------------------------------
def reference_forward(params, x, edge_index, edge_attr, batch, num_relations,
                      num_graphs, *, mxu_bf16=False):
    if mxu_bf16:
        def mm(a, b):  # mirrors the kernel: bf16 dot inputs, f32 accumulation
            return jnp.dot(a.astype(jnp.bfloat16).astype(jnp.float32),
                           b.astype(jnp.bfloat16).astype(jnp.float32))
    else:
        mm = jnp.dot

    edge_type = jnp.argmax(edge_attr, axis=1)
    n = x.shape[0]
    adj = build_adj(edge_index, edge_type, n, num_relations)
    pool = build_pool(batch, n, num_graphs)

    def conv(h, w_rel, w_root, b):
        out = mm(h, w_root) + b
        for r in range(num_relations):
            out = out + mm(mm(adj[r], h), w_rel[r])
        return jnp.maximum(out, 0.0)

    h = conv(x, params["conv1_w"], params["conv1_root"], params["conv1_b"])
    h = conv(h, params["conv2_w"], params["conv2_root"], params["conv2_b"])
    pooled = mm(pool, h)
    z1 = jnp.maximum(mm(pooled, params["lin1_w"]) + params["lin1_b"], 0.0)
    z2 = jnp.maximum(mm(z1, params["lin2_w"]) + params["lin2_b"], 0.0)
    logits = mm(z2, params["lin3_w"]) + params["lin3_b"]
    return jax.nn.log_softmax(logits, axis=-1)


# -----------------------------------------------------------------------------
# Main
# -----------------------------------------------------------------------------
if __name__ == "__main__":
    # Small, deterministic config (mirrors args.*)
    num_features = 16
    nhid = 32
    num_classes = 4
    num_relations = 3
    num_nodes = 24
    num_edges = 48
    num_graphs = 2
    # dropout_ratio irrelevant: eval-mode forward (dropout = identity)

    key = jax.random.PRNGKey(0)
    ks = jax.random.split(key, 16)

    params = {
        "conv1_w":    0.1 * jax.random.normal(ks[0], (num_relations, num_features, nhid), jnp.float32),
        "conv1_root": 0.1 * jax.random.normal(ks[1], (num_features, nhid), jnp.float32),
        "conv1_b":    0.1 * jax.random.normal(ks[2], (nhid,), jnp.float32),
        "conv2_w":    0.1 * jax.random.normal(ks[3], (num_relations, nhid, nhid), jnp.float32),
        "conv2_root": 0.1 * jax.random.normal(ks[4], (nhid, nhid), jnp.float32),
        "conv2_b":    0.1 * jax.random.normal(ks[5], (nhid,), jnp.float32),
        "lin1_w":     0.1 * jax.random.normal(ks[6], (nhid, nhid), jnp.float32),
        "lin1_b":     0.1 * jax.random.normal(ks[7], (nhid,), jnp.float32),
        "lin2_w":     0.1 * jax.random.normal(ks[8], (nhid, nhid // 2), jnp.float32),
        "lin2_b":     0.1 * jax.random.normal(ks[9], (nhid // 2,), jnp.float32),
        "lin3_w":     0.1 * jax.random.normal(ks[10], (nhid // 2, num_classes), jnp.float32),
        "lin3_b":     0.1 * jax.random.normal(ks[11], (num_classes,), jnp.float32),
    }

    # Synthetic graph batch (2 graphs, 12 nodes each)
    x = jax.random.normal(ks[12], (num_nodes, num_features), jnp.float32)
    src = jax.random.randint(ks[13], (num_edges,), 0, num_nodes, jnp.int32)
    dst = jax.random.randint(ks[14], (num_edges,), 0, num_nodes, jnp.int32)
    edge_index = jnp.stack([src, dst], axis=0)                       # [2, E]
    edge_attr = jax.random.normal(ks[15], (num_edges, num_relations), jnp.float32)
    batch = jnp.concatenate([jnp.zeros(12, jnp.int32), jnp.ones(12, jnp.int32)])

    # Weight packing hoisted out of the per-call path (done once).
    packed = prepare_params(params, num_relations)

    out = rgcn_forward(packed, x, edge_index, edge_attr, batch,
                       num_relations=num_relations, num_graphs=num_graphs,
                       num_classes=num_classes)
    out = jax.block_until_ready(out)

    # Tight check vs a reference that mirrors the kernel's bf16 MXU operands,
    # plus a looser check vs the pure-f32 module semantics.
    ref_bf16 = reference_forward(params, x, edge_index, edge_attr, batch,
                                 num_relations, num_graphs, mxu_bf16=True)
    ref_f32 = reference_forward(params, x, edge_index, edge_attr, batch,
                                num_relations, num_graphs, mxu_bf16=False)

    assert out.shape == (num_graphs, num_classes)
    assert jnp.allclose(out, ref_bf16, atol=2e-3, rtol=2e-3), "mismatch vs bf16-MXU reference"
    assert jnp.allclose(out, ref_f32, atol=1e-1, rtol=1e-1), "mismatch vs f32 reference"

    print("KERNEL_OK")
</pallas_src>

<mosaic_0001>
module attributes {stable_mosaic.version = 11 : i64} {
  func.func private @main(%arg0: i32) attributes {dimension_semantics = [#tpu.dimension_semantics<core_parallel>], iteration_bounds = array<i64: 2>, tpu.core_type = #tpu.core_type<sc_scalar_subcore>, window_params = []} {
    return
  }
}

module attributes {stable_mosaic.version = 11 : i64} {
  func.func private @main(%arg0: i32) attributes {dimension_semantics = [#tpu.dimension_semantics<core_parallel>], iteration_bounds = array<i64: 2>, tpu.core_type = #tpu.core_type<sc_scalar_subcore>, window_params = []} {
    return
  }
}

module attributes {stable_mosaic.version = 11 : i64} {
  func.func @_fused_rgcn_kernel(%arg0: memref<24x16xbf16, #tpu.memory_space<vmem>>, %arg1: memref<96x24xbf16, #tpu.memory_space<vmem>>, %arg2: memref<8x24xbf16, #tpu.memory_space<vmem>>, %arg3: memref<64x32xbf16, #tpu.memory_space<vmem>>, %arg4: memref<1x32xf32, #tpu.memory_space<vmem>>, %arg5: memref<128x32xbf16, #tpu.memory_space<vmem>>, %arg6: memref<1x32xf32, #tpu.memory_space<vmem>>, %arg7: memref<32x32xbf16, #tpu.memory_space<vmem>>, %arg8: memref<1x32xf32, #tpu.memory_space<vmem>>, %arg9: memref<32x16xbf16, #tpu.memory_space<vmem>>, %arg10: memref<1x16xf32, #tpu.memory_space<vmem>>, %arg11: memref<16x128xbf16, #tpu.memory_space<vmem>>, %arg12: memref<1x128xf32, #tpu.memory_space<vmem>>, %arg13: memref<8x128xf32, #tpu.memory_space<vmem>>) attributes {dimension_semantics = [], scalar_prefetch = 0 : i64, scratch_operands = 0 : i64, tpu.core_type = #tpu.core_type<tc>} {
    %c0 = arith.constant 0 : index
    %c0_0 = arith.constant 0 : index
    %0 = vector.load %arg1[%c0, %c0_0] : memref<96x24xbf16, #tpu.memory_space<vmem>>, vector<96x24xbf16>
    %c0_1 = arith.constant 0 : index
    %c0_2 = arith.constant 0 : index
    %1 = vector.load %arg0[%c0_1, %c0_2] : memref<24x16xbf16, #tpu.memory_space<vmem>>, vector<24x16xbf16>
    %cst = arith.constant dense<0.000000e+00> : vector<96x16xf32>
    %2 = tpu.matmul %0, %1, %cst {dimension_numbers = #tpu.dot_dimension_numbers<[1], [0], [0], [1], [0, 0, 1, 1], [], []>} : vector<96x24xbf16>, vector<24x16xbf16>, vector<96x16xf32> -> vector<96x16xf32>
    %3 = vector.extract_strided_slice %2 {offsets = [0, 0], sizes = [24, 16], strides = [1, 1]} : vector<96x16xf32> to vector<24x16xf32>
    %4 = vector.extract_strided_slice %2 {offsets = [24, 0], sizes = [24, 16], strides = [1, 1]} : vector<96x16xf32> to vector<24x16xf32>
    %5 = vector.extract_strided_slice %2 {offsets = [48, 0], sizes = [24, 16], strides = [1, 1]} : vector<96x16xf32> to vector<24x16xf32>
    %6 = vector.extract_strided_slice %2 {offsets = [72, 0], sizes = [24, 16], strides = [1, 1]} : vector<96x16xf32> to vector<24x16xf32>
    %7 = tpu.concatenate %3, %4, %5, %6 in 1 : vector<24x16xf32>, vector<24x16xf32>, vector<24x16xf32>, vector<24x16xf32> -> vector<24x64xf32>
    %8 = arith.truncf %7 : vector<24x64xf32> to vector<24x64xbf16>
    %c0_3 = arith.constant 0 : index
    %c0_4 = arith.constant 0 : index
    %9 = vector.load %arg3[%c0_3, %c0_4] : memref<64x32xbf16, #tpu.memory_space<vmem>>, vector<64x32xbf16>
    %cst_5 = arith.constant dense<0.000000e+00> : vector<24x32xf32>
    %10 = tpu.matmul %8, %9, %cst_5 {dimension_numbers = #tpu.dot_dimension_numbers<[1], [0], [0], [1], [0, 0, 1, 1], [], []>} : vector<24x64xbf16>, vector<64x32xbf16>, vector<24x32xf32> -> vector<24x32xf32>
    %c0_6 = arith.constant 0 : index
    %c0_7 = arith.constant 0 : index
    %11 = vector.load %arg4[%c0_6, %c0_7] : memref<1x32xf32, #tpu.memory_space<vmem>>, vector<1x32xf32>
    %12 = vector.broadcast %11 : vector<1x32xf32> to vector<24x32xf32>
    %13 = arith.addf %10, %12 : vector<24x32xf32>
    %cst_8 = arith.constant 0.000000e+00 : f32
    %14 = vector.broadcast %cst_8 : f32 to vector<24x32xf32>
    %15 = arith.maximumf %13, %14 : vector<24x32xf32>
    %16 = arith.truncf %15 : vector<24x32xf32> to vector<24x32xbf16>
    %cst_9 = arith.constant dense<0.000000e+00> : vector<96x32xf32>
    %17 = tpu.matmul %0, %16, %cst_9 {dimension_numbers = #tpu.dot_dimension_numbers<[1], [0], [0], [1], [0, 0, 1, 1], [], []>} : vector<96x24xbf16>, vector<24x32xbf16>, vector<96x32xf32> -> vector<96x32xf32>
    %18 = vector.extract_strided_slice %17 {offsets = [0, 0], sizes = [24, 32], strides = [1, 1]} : vector<96x32xf32> to vector<24x32xf32>
    %19 = vector.extract_strided_slice %17 {offsets = [24, 0], sizes = [24, 32], strides = [1, 1]} : vector<96x32xf32> to vector<24x32xf32>
    %20 = vector.extract_strided_slice %17 {offsets = [48, 0], sizes = [24, 32], strides = [1, 1]} : vector<96x32xf32> to vector<24x32xf32>
    %21 = vector.extract_strided_slice %17 {offsets = [72, 0], sizes = [24, 32], strides = [1, 1]} : vector<96x32xf32> to vector<24x32xf32>
    %22 = tpu.concatenate %18, %19, %20, %21 in 1 : vector<24x32xf32>, vector<24x32xf32>, vector<24x32xf32>, vector<24x32xf32> -> vector<24x128xf32>
    %23 = arith.truncf %22 : vector<24x128xf32> to vector<24x128xbf16>
    %c0_10 = arith.constant 0 : index
    %c0_11 = arith.constant 0 : index
    %24 = vector.load %arg5[%c0_10, %c0_11] : memref<128x32xbf16, #tpu.memory_space<vmem>>, vector<128x32xbf16>
    %cst_12 = arith.constant dense<0.000000e+00> : vector<24x32xf32>
    %25 = tpu.matmul %23, %24, %cst_12 {dimension_numbers = #tpu.dot_dimension_numbers<[1], [0], [0], [1], [0, 0, 1, 1], [], []>} : vector<24x128xbf16>, vector<128x32xbf16>, vector<24x32xf32> -> vector<24x32xf32>
    %c0_13 = arith.constant 0 : index
    %c0_14 = arith.constant 0 : index
    %26 = vector.load %arg6[%c0_13, %c0_14] : memref<1x32xf32, #tpu.memory_space<vmem>>, vector<1x32xf32>
    %27 = vector.broadcast %26 : vector<1x32xf32> to vector<24x32xf32>
    %28 = arith.addf %25, %27 : vector<24x32xf32>
    %cst_15 = arith.constant 0.000000e+00 : f32
    %29 = vector.broadcast %cst_15 : f32 to vector<24x32xf32>
    %30 = arith.maximumf %28, %29 : vector<24x32xf32>
    %c0_16 = arith.constant 0 : index
    %c0_17 = arith.constant 0 : index
    %31 = vector.load %arg2[%c0_16, %c0_17] : memref<8x24xbf16, #tpu.memory_space<vmem>>, vector<8x24xbf16>
    %32 = arith.truncf %30 : vector<24x32xf32> to vector<24x32xbf16>
    %cst_18 = arith.constant dense<0.000000e+00> : vector<8x32xf32>
    %33 = tpu.matmul %31, %32, %cst_18 {dimension_numbers = #tpu.dot_dimension_numbers<[1], [0], [0], [1], [0, 0, 1, 1], [], []>} : vector<8x24xbf16>, vector<24x32xbf16>, vector<8x32xf32> -> vector<8x32xf32>
    %34 = arith.truncf %33 : vector<8x32xf32> to vector<8x32xbf16>
    %c0_19 = arith.constant 0 : index
    %c0_20 = arith.constant 0 : index
    %35 = vector.load %arg7[%c0_19, %c0_20] : memref<32x32xbf16, #tpu.memory_space<vmem>>, vector<32x32xbf16>
    %cst_21 = arith.constant dense<0.000000e+00> : vector<8x32xf32>
    %36 = tpu.matmul %34, %35, %cst_21 {dimension_numbers = #tpu.dot_dimension_numbers<[1], [0], [0], [1], [0, 0, 1, 1], [], []>} : vector<8x32xbf16>, vector<32x32xbf16>, vector<8x32xf32> -> vector<8x32xf32>
    %c0_22 = arith.constant 0 : index
    %c0_23 = arith.constant 0 : index
    %37 = vector.load %arg8[%c0_22, %c0_23] : memref<1x32xf32, #tpu.memory_space<vmem>>, vector<1x32xf32>
    %38 = vector.broadcast %37 : vector<1x32xf32> to vector<8x32xf32>
    %39 = arith.addf %36, %38 : vector<8x32xf32>
    %cst_24 = arith.constant 0.000000e+00 : f32
    %40 = vector.broadcast %cst_24 : f32 to vector<8x32xf32>
    %41 = arith.maximumf %39, %40 : vector<8x32xf32>
    %42 = arith.truncf %41 : vector<8x32xf32> to vector<8x32xbf16>
    %c0_25 = arith.constant 0 : index
    %c0_26 = arith.constant 0 : index
    %43 = vector.load %arg9[%c0_25, %c0_26] : memref<32x16xbf16, #tpu.memory_space<vmem>>, vector<32x16xbf16>
    %cst_27 = arith.constant dense<0.000000e+00> : vector<8x16xf32>
    %44 = tpu.matmul %42, %43, %cst_27 {dimension_numbers = #tpu.dot_dimension_numbers<[1], [0], [0], [1], [0, 0, 1, 1], [], []>} : vector<8x32xbf16>, vector<32x16xbf16>, vector<8x16xf32> -> vector<8x16xf32>
    %c0_28 = arith.constant 0 : index
    %c0_29 = arith.constant 0 : index
    %45 = vector.load %arg10[%c0_28, %c0_29] : memref<1x16xf32, #tpu.memory_space<vmem>>, vector<1x16xf32>
    %46 = vector.broadcast %45 : vector<1x16xf32> to vector<8x16xf32>
    %47 = arith.addf %44, %46 : vector<8x16xf32>
    %cst_30 = arith.constant 0.000000e+00 : f32
    %48 = vector.broadcast %cst_30 : f32 to vector<8x16xf32>
    %49 = arith.maximumf %47, %48 : vector<8x16xf32>
    %50 = arith.truncf %49 : vector<8x16xf32> to vector<8x16xbf16>
    %c0_31 = arith.constant 0 : index
    %c0_32 = arith.constant 0 : index
    %51 = vector.load %arg11[%c0_31, %c0_32] : memref<16x128xbf16, #tpu.memory_space<vmem>>, vector<16x128xbf16>
    %cst_33 = arith.constant dense<0.000000e+00> : vector<8x128xf32>
    %52 = tpu.matmul %50, %51, %cst_33 {dimension_numbers = #tpu.dot_dimension_numbers<[1], [0], [0], [1], [0, 0, 1, 1], [], []>} : vector<8x16xbf16>, vector<16x128xbf16>, vector<8x128xf32> -> vector<8x128xf32>
    %c0_34 = arith.constant 0 : index
    %c0_35 = arith.constant 0 : index
    %53 = vector.load %arg12[%c0_34, %c0_35] : memref<1x128xf32, #tpu.memory_space<vmem>>, vector<1x128xf32>
    %54 = vector.broadcast %53 : vector<1x128xf32> to vector<8x128xf32>
    %55 = arith.addf %52, %54 : vector<8x128xf32>
    %cst_36 = arith.constant dense<0xFF800000> : vector<8xf32>
    %56 = vector.multi_reduction <maximumf>, %55, %cst_36 [1] : vector<8x128xf32> to vector<8xf32>
    %57 = vector.shape_cast %56 : vector<8xf32> to vector<8x1xf32>
    %58 = vector.broadcast %57 : vector<8x1xf32> to vector<8x128xf32>
    %59 = arith.subf %55, %58 : vector<8x128xf32>
    %60 = math.exp %59 : vector<8x128xf32>
    %cst_37 = arith.constant dense<0.000000e+00> : vector<8xf32>
    %61 = vector.multi_reduction <add>, %60, %cst_37 [1] : vector<8x128xf32> to vector<8xf32>
    %62 = vector.shape_cast %61 : vector<8xf32> to vector<8x1xf32>
    %63 = math.log %62 : vector<8x1xf32>
    %64 = vector.broadcast %63 : vector<8x1xf32> to vector<8x128xf32>
    %65 = arith.subf %59, %64 : vector<8x128xf32>
    %c0_38 = arith.constant 0 : index
    %c0_39 = arith.constant 0 : index
    %66 = vector.load %arg13[%c0_38, %c0_39] : memref<8x128xf32, #tpu.memory_space<vmem>>, vector<8x128xf32>
    tpu.vector_store %arg13[%c0_38, %c0_39], %65 {strides = array<i32>} : memref<8x128xf32, #tpu.memory_space<vmem>>, vector<8x128xf32>,
    return
  }
}

</mosaic_0001>

<llo_original>
// kernel: rgcn_forward.1
$region0: #{rgcn_forward.1}
  #allocation0 [shape = 'u32[]', space=smem, size = 0x4, offset = 0x4, fixed_abs, tag = 'smem constant byte address 0x4 - core index']
  #allocation1 [shape = 'u32[144,128]{1,0:T(1,128)}', space=vmem, size = 0x12000, scoped, tag = 'internal scratch']
  %s0 = inlined_call_operand.vmem [shape: bf16[24,16], index: 0, kind: input, shape index: {}]
  %s1 = inlined_call_operand.vmem [shape: bf16[96,24], index: 1, kind: input, shape index: {}]
  %s2 = inlined_call_operand.vmem [shape: bf16[8,24], index: 2, kind: input, shape index: {}]
  %s3 = inlined_call_operand.vmem [shape: bf16[64,32], index: 3, kind: input, shape index: {}]
  %s4 = inlined_call_operand.vmem [shape: f32[1,32], index: 4, kind: input, shape index: {}]
  %s5 = inlined_call_operand.vmem [shape: bf16[128,32], index: 5, kind: input, shape index: {}]
  %s6 = inlined_call_operand.vmem [shape: f32[1,32], index: 6, kind: input, shape index: {}]
  %s7 = inlined_call_operand.vmem [shape: bf16[32,32], index: 7, kind: input, shape index: {}]
  %s8 = inlined_call_operand.vmem [shape: f32[1,32], index: 8, kind: input, shape index: {}]
  %s9 = inlined_call_operand.vmem [shape: bf16[32,16], index: 9, kind: input, shape index: {}]
  %s10 = inlined_call_operand.vmem [shape: f32[1,16], index: 10, kind: input, shape index: {}]
  %s11 = inlined_call_operand.vmem [shape: bf16[16,128], index: 11, kind: input, shape index: {}]
  %s12 = inlined_call_operand.vmem [shape: f32[1,128], index: 12, kind: input, shape index: {}]
  %s13 = inlined_call_operand.vmem [shape: f32[8,128], index: 13, kind: output, shape index: {}]
  %s14 = sld [smem:[#allocation0]]
  $region62: #{rgcn_forward.1} parent=0
    _
  %s16 = ssub.s32 1, %s14
  %s17 = scalar_select 0, %s16, %s14
  // Predicated region
  $region2: #{rgcn_forward.1} parent=0 // pred_check
    _
  $region3: #{rgcn_forward.1} parent=0 // pred_check_branch
    %19 = sbr.rel (0) target = $region5
  $region4: #{rgcn_forward.1} parent=0 // pred_region
    _
  $region5: #{rgcn_forward.1} parent=0 // pred_fallthru
    _
  // Predicated region
  $region6: #{rgcn_forward.1} parent=0 // pred_check
    _
  $region7: #{rgcn_forward.1} parent=0 // pred_check_branch
    %21 = sbr.rel (0) target = $region9
  $region8: #{rgcn_forward.1} parent=0 // pred_region
    _
  $region9: #{rgcn_forward.1} parent=0 // pred_fallthru
    _
  // Predicated region
  $region10: #{rgcn_forward.1} parent=0 // pred_check
    _
  $region11: #{rgcn_forward.1} parent=0 // pred_check_branch
    %23 = sbr.rel (0) target = $region13
  $region12: #{rgcn_forward.1} parent=0 // pred_region
    _
  $region13: #{rgcn_forward.1} parent=0 // pred_fallthru
    _
  // Predicated region
  $region14: #{rgcn_forward.1} parent=0 // pred_check
    _
  $region15: #{rgcn_forward.1} parent=0 // pred_check_branch
    %25 = sbr.rel (0) target = $region17
  $region16: #{rgcn_forward.1} parent=0 // pred_region
    _
  $region17: #{rgcn_forward.1} parent=0 // pred_fallthru
    _
  // Predicated region
  $region18: #{rgcn_forward.1} parent=0 // pred_check
    _
  $region19: #{rgcn_forward.1} parent=0 // pred_check_branch
    %27 = sbr.rel (0) target = $region21
  $region20: #{rgcn_forward.1} parent=0 // pred_region
    _
  $region21: #{rgcn_forward.1} parent=0 // pred_fallthru
    _
  // Predicated region
  $region22: #{rgcn_forward.1} parent=0 // pred_check
    _
  $region23: #{rgcn_forward.1} parent=0 // pred_check_branch
    %29 = sbr.rel (0) target = $region25
  $region24: #{rgcn_forward.1} parent=0 // pred_region
    _
  $region25: #{rgcn_forward.1} parent=0 // pred_fallthru
    _
  // Predicated region
  $region26: #{rgcn_forward.1} parent=0 // pred_check
    _
  $region27: #{rgcn_forward.1} parent=0 // pred_check_branch
    %31 = sbr.rel (0) target = $region29
  $region28: #{rgcn_forward.1} parent=0 // pred_region
    _
  $region29: #{rgcn_forward.1} parent=0 // pred_fallthru
    _
  // Predicated region
  $region30: #{rgcn_forward.1} parent=0 // pred_check
    _
  $region31: #{rgcn_forward.1} parent=0 // pred_check_branch
    %33 = sbr.rel (0) target = $region33
  $region32: #{rgcn_forward.1} parent=0 // pred_region
    _
  $region33: #{rgcn_forward.1} parent=0 // pred_fallthru
    _
  // Predicated region
  $region34: #{rgcn_forward.1} parent=0 // pred_check
    _
  $region35: #{rgcn_forward.1} parent=0 // pred_check_branch
    %35 = sbr.rel (0) target = $region37
  $region36: #{rgcn_forward.1} parent=0 // pred_region
    _
  $region37: #{rgcn_forward.1} parent=0 // pred_fallthru
    _
  // Predicated region
  $region38: #{rgcn_forward.1} parent=0 // pred_check
    _
  $region39: #{rgcn_forward.1} parent=0 // pred_check_branch
    %37 = sbr.rel (0) target = $region41
  $region40: #{rgcn_forward.1} parent=0 // pred_region
    _
  $region41: #{rgcn_forward.1} parent=0 // pred_fallthru
    _
  // Predicated region
  $region42: #{rgcn_forward.1} parent=0 // pred_check
    _
  $region43: #{rgcn_forward.1} parent=0 // pred_check_branch
    %39 = sbr.rel (0) target = $region45
  $region44: #{rgcn_forward.1} parent=0 // pred_region
    _
  $region45: #{rgcn_forward.1} parent=0 // pred_fallthru
    _
  // Predicated region
  $region46: #{rgcn_forward.1} parent=0 // pred_check
    _
  $region47: #{rgcn_forward.1} parent=0 // pred_check_branch
    %41 = sbr.rel (0) target = $region49
  $region48: #{rgcn_forward.1} parent=0 // pred_region
    _
  $region49: #{rgcn_forward.1} parent=0 // pred_fallthru
    _
  // Predicated region
  $region50: #{rgcn_forward.1} parent=0 // pred_check
    _
  $region51: #{rgcn_forward.1} parent=0 // pred_check_branch
    %43 = sbr.rel (0) target = $region53
  $region52: #{rgcn_forward.1} parent=0 // pred_region
    _
  $region53: #{rgcn_forward.1} parent=0 // pred_fallthru
    _
  %v45 = vld [vmem:[%s1] sm:$0xf]
  %v46 = vld [vmem:[%s1 + $0x4] sm:$0xf]
  %v47 = vld [vmem:[%s1 + $0x8] sm:$0xf]
  %v48 = vld [vmem:[%s1 + $0xc] sm:$0xf]
  %v49 = vld [vmem:[%s1 + $0x10] sm:$0xf]
  %v50 = vld [vmem:[%s1 + $0x14] sm:$0xf]
  %v51 = vld [vmem:[%s1 + $0x18] sm:$0xf]
  %v52 = vld [vmem:[%s1 + $0x1c] sm:$0xf]
  %v53 = vld [vmem:[%s1 + $0x20] sm:$0xf]
  %v54 = vld [vmem:[%s1 + $0x24] sm:$0xf]
  %v55 = vld [vmem:[%s1 + $0x28] sm:$0xf]
  %v56 = vld [vmem:[%s1 + $0x2c] sm:$0xf]
  %v57 = vld [vmem:[%s0] sm:$0xf]
  %v58 = vld [vmem:[%s0 + $0x4] sm:$0xf]
  %v59 = vld [vmem:[%s0 + $0x8] sm:$0xf]
  %v72 = vunpack.c.l.b16 %v45
  %v73 = vunpack.c.l.b16 %v46
  %v74 = vunpack.c.l.b16 %v47
  %v75 = vunpack.c.l.b16 %v48
  %v76 = vunpack.c.l.b16 %v49
  %v77 = vunpack.c.l.b16 %v50
  %v78 = vunpack.c.l.b16 %v51
  %v79 = vunpack.c.l.b16 %v52
  %v80 = vunpack.c.l.b16 %v53
  %v81 = vunpack.c.l.b16 %v54
  %v82 = vunpack.c.l.b16 %v55
  %v83 = vunpack.c.l.b16 %v56
  %v84 = vpack.c.b16 %v73, %v72
  %v85 = vpack.c.b16 %v75, %v74
  %v86 = vpack.c.b16 %v77, %v76
  %v87 = vpack.c.b16 %v79, %v78
  %v88 = vpack.c.b16 %v81, %v80
  %v89 = vpack.c.b16 %v83, %v82
  %v93 = vunpack.c.l.b16 %v57
  %v94 = vunpack.c.l.b16 %v58
  %v95 = vunpack.c.l.b16 %v59
  %v96 = vpack.c.b16 %v94, %v93
  %v97 = vpack.c.b16 %v95, %v95
  %vm99 = vcmask 195584
  %v101 = vsel %vm99, %v84, 0
  %v104 = vsel %vm99, %v85, 0
  %v107 = vsel %vm99, %v86, 0
  %v110 = vsel %vm99, %v87, 0
  %v113 = vsel %vm99, %v88, 0
  %v116 = vsel %vm99, %v89, 0
  %vm118 = vcmask 1043456
  %v120 = vsel %vm118, %v97, 0
  %122 = vmatprep.subr.bf16.mxu0 0
  %123 = vmatpush1.bf16.msra.mxu0 %v96
  %124 = vmatprep.subr.bf16.mxu0 0
  %125 = vmatpush1.bf16.msra.mxu0 %v120
  %126 = vmatprep.subr.bf16.mxu0 0
  %127 = vmatpush1.bf16.msra.mxu0 0
  %128 = vmatprep.subr.bf16.mxu0 0
  %129 = vmatpush1.bf16.msra.mxu0 0
  %130 = vmatprep.subr.bf16.mxu0 0
  %131 = vmatpush1.bf16.msra.mxu0 0
  %132 = vmatprep.subr.bf16.mxu0 0
  %133 = vmatpush1.bf16.msra.mxu0 0
  %134 = vmatprep.subr.bf16.mxu0 0
  %135 = vmatpush1.bf16.msra.mxu0 0
  %136 = vmatprep.subr.bf16.mxu0 0
  %137 = vmatpush1.bf16.msra.mxu0 0
  %138 = vmatprep.subr.bf16.mxu0 0
  %139 = vmatpush1.bf16.msra.mxu0 0
  %140 = vmatprep.subr.bf16.mxu0 0
  %141 = vmatpush1.bf16.msra.mxu0 0
  %142 = vmatprep.subr.bf16.mxu0 0
  %143 = vmatpush1.bf16.msra.mxu0 0
  %144 = vmatprep.subr.bf16.mxu0 0
  %145 = vmatpush1.bf16.msra.mxu0 0
  %146 = vmatprep.subr.bf16.mxu0 0
  %147 = vmatpush1.bf16.msra.mxu0 0
  %148 = vmatprep.subr.bf16.mxu0 0
  %149 = vmatpush1.bf16.msra.mxu0 0
  %150 = vmatprep.subr.bf16.mxu0 0
  %151 = vmatpush1.bf16.msra.mxu0 0
  %152 = vmatprep.subr.bf16.mxu0 0
  %153 = vmatpush1.bf16.msra.mxu0 0
  %154 = vmatprep.mubr.bf16.mxu0 0
  %155 = vmatmul.mubr.bf16.gmra.mrb[0].mxu0 %v101
  %v156 = vpop.f32.mrb[0].mxu0
  %v157 = vadd.f32 0.0, %v156
  %v158 = vpop.f32.mrb[0].mxu0
  %v159 = vpop.f32.mrb[0].mxu0
  %v160 = vadd.f32 0.0, %v159
  %v161 = vpop.f32.mrb[0].mxu0
  %162 = vmatprep.mubr.bf16.mxu0 0
  %163 = vmatmul.mubr.bf16.gmra.mrb[0].mxu0 %v104
  %v164 = vpop.f32.mrb[0].mxu0
  %v165 = vadd.f32 0.0, %v164
  %v166 = vpop.f32.mrb[0].mxu0
  %v167 = vpop.f32.mrb[0].mxu0
  %v168 = vadd.f32 0.0, %v167
  %v169 = vpop.f32.mrb[0].mxu0
  %170 = vmatprep.mubr.bf16.mxu0 0
  %171 = vmatmul.mubr.bf16.gmra.mrb[0].mxu0 %v107
  %v172 = vpop.f32.mrb[0].mxu0
  %v173 = vadd.f32 0.0, %v172
  %v174 = vpop.f32.mrb[0].mxu0
  %v175 = vpop.f32.mrb[0].mxu0
  %v176 = vadd.f32 0.0, %v175
  %v177 = vpop.f32.mrb[0].mxu0
  %178 = vmatprep.mubr.bf16.mxu0 0
  %179 = vmatmul.mubr.bf16.gmra.mrb[0].mxu0 %v110
  %v180 = vpop.f32.mrb[0].mxu0
  %v181 = vadd.f32 0.0, %v180
  %v182 = vpop.f32.mrb[0].mxu0
  %v183 = vpop.f32.mrb[0].mxu0
  %v184 = vadd.f32 0.0, %v183
  %v185 = vpop.f32.mrb[0].mxu0
  %186 = vmatprep.mubr.bf16.mxu0 0
  %187 = vmatmul.mubr.bf16.gmra.mrb[0].mxu0 %v113
  %v188 = vpop.f32.mrb[0].mxu0
  %v189 = vadd.f32 0.0, %v188
  %v190 = vpop.f32.mrb[0].mxu0
  %v191 = vpop.f32.mrb[0].mxu0
  %v192 = vadd.f32 0.0, %v191
  %v193 = vpop.f32.mrb[0].mxu0
  %194 = vmatprep.mubr.bf16.mxu0 0
  %195 = vmatmul.mubr.bf16.gmra.mrb[0].mxu0 %v116
  %v196 = vpop.f32.mrb[0].mxu0
  %v197 = vadd.f32 0.0, %v196
  %v198 = vpop.f32.mrb[0].mxu0
  %v199 = vpop.f32.mrb[0].mxu0
  %v200 = vadd.f32 0.0, %v199
  %v201 = vpop.f32.mrb[0].mxu0
  %202 = vdwg.mxu0
  %206 = vrot.lane.b32.xlu0 %v168, 16
  %v207 = vpop.permute.xlu0 %206
  %208 = vrot.lane.b32.xlu0 %v173, 16
  %v209 = vpop.permute.xlu0 %208
  %210 = vrot.lane.b32.xlu0 %v176, 16
  %v211 = vpop.permute.xlu0 %210
  %218 = vrot.lane.b32.xlu0 %v181, 32
  %v219 = vpop.permute.xlu0 %218
  %220 = vrot.lane.b32.xlu0 %v184, 32
  %v221 = vpop.permute.xlu0 %220
  %222 = vrot.lane.b32.xlu0 %v189, 32
  %v223 = vpop.permute.xlu0 %222
  %230 = vrot.lane.b32.xlu0 %v192, 48
  %v231 = vpop.permute.xlu0 %230
  %232 = vrot.lane.b32.xlu0 %v197, 48
  %v233 = vpop.permute.xlu0 %232
  %234 = vrot.lane.b32.xlu0 %v200, 48
  %v235 = vpop.permute.xlu0 %234
  %vm239 = vcmask 130048
  %v240 = vsel %vm239, %v157, %v207
  %v241 = vsel %vm239, %v160, %v209
  %v242 = vsel %vm239, %v165, %v211
  %vm243 = vcmask 261120
  %v244 = vsel %vm243, %v240, %v219
  %v245 = vsel %vm243, %v241, %v221
  %v246 = vsel %vm243, %v242, %v223
  %vm247 = vcmask 392192
  %v248 = vsel %vm247, %v244, %v231
  %v249 = vsel %vm247, %v245, %v233
  %v250 = vsel %vm247, %v246, %v235
  %v251 = vpack.c.bf16 %v249, %v248
  %v252 = vpack.c.bf16 %v250, %v250
  %v253 = vld [vmem:[%s3] sm:$0xf]
  %v254 = vld [vmem:[%s3 + $0x4] sm:$0xf]
  %v255 = vld [vmem:[%s3 + $0x8] sm:$0xf]
  %v256 = vld [vmem:[%s3 + $0xc] sm:$0xf]
  %v257 = vld [vmem:[%s3 + $0x10] sm:$0xf]
  %v258 = vld [vmem:[%s3 + $0x14] sm:$0xf]
  %v259 = vld [vmem:[%s3 + $0x18] sm:$0xf]
  %v260 = vld [vmem:[%s3 + $0x1c] sm:$0xf]
  %v261 = vld [vmem:[%s4] sm:$0x1]
  %v263 = vlaneseq
  %v264 = vshrl.u32 %v263, 7
  %v265 = vsub.s32 0, %v264
  %v266 = vrot.slane %v261, %v265
  %v276 = vunpack.c.l.b16 %v253
  %v277 = vunpack.c.l.b16 %v254
  %v278 = vunpack.c.l.b16 %v255
  %v279 = vunpack.c.l.b16 %v256
  %v280 = vunpack.c.l.b16 %v257
  %v281 = vunpack.c.l.b16 %v258
  %v282 = vunpack.c.l.b16 %v259
  %v283 = vunpack.c.l.b16 %v260
  %v284 = vpack.c.b16 %v277, %v276
  %v285 = vpack.c.b16 %v279, %v278
  %v286 = vpack.c.b16 %v281, %v280
  %v287 = vpack.c.b16 %v283, %v282
  %vm292 = vcmask 523264
  %v294 = vsel %vm292, %v251, 0
  %v297 = vsel %vm292, %v252, 0
  %299 = vmatprep.subr.bf16.mxu0 0
  %300 = vmatpush1.bf16.msra.mxu0 %v284
  %301 = vmatprep.subr.bf16.mxu0 0
  %302 = vmatpush1.bf16.msra.mxu0 %v285
  %303 = vmatprep.subr.bf16.mxu0 0
  %304 = vmatpush1.bf16.msra.mxu0 %v286
  %305 = vmatprep.subr.bf16.mxu0 0
  %306 = vmatpush1.bf16.msra.mxu0 %v287
  %307 = vmatprep.subr.bf16.mxu0 0
  %308 = vmatpush1.bf16.msra.mxu0 0
  %309 = vmatprep.subr.bf16.mxu0 0
  %310 = vmatpush1.bf16.msra.mxu0 0
  %311 = vmatprep.subr.bf16.mxu0 0
  %312 = vmatpush1.bf16.msra.mxu0 0
  %313 = vmatprep.subr.bf16.mxu0 0
  %314 = vmatpush1.bf16.msra.mxu0 0
  %315 = vmatprep.subr.bf16.mxu0 0
  %316 = vmatpush1.bf16.msra.mxu0 0
  %317 = vmatprep.subr.bf16.mxu0 0
  %318 = vmatpush1.bf16.msra.mxu0 0
  %319 = vmatprep.subr.bf16.mxu0 0
  %320 = vmatpush1.bf16.msra.mxu0 0
  %321 = vmatprep.subr.bf16.mxu0 0
  %322 = vmatpush1.bf16.msra.mxu0 0
  %323 = vmatprep.subr.bf16.mxu0 0
  %324 = vmatpush1.bf16.msra.mxu0 0
  %325 = vmatprep.subr.bf16.mxu0 0
  %326 = vmatpush1.bf16.msra.mxu0 0
  %327 = vmatprep.subr.bf16.mxu0 0
  %328 = vmatpush1.bf16.msra.mxu0 0
  %329 = vmatprep.subr.bf16.mxu0 0
  %330 = vmatpush1.bf16.msra.mxu0 0
  %331 = vmatprep.mubr.bf16.mxu0 0
  %332 = vmatmul.mubr.bf16.gmra.mrb[0].mxu0 %v294
  %v333 = vpop.f32.mrb[0].mxu0
  %v334 = vadd.f32 %v266, %v333
  %v335 = vpop.f32.mrb[0].mxu0
  %v336 = vpop.f32.mrb[0].mxu0
  %v337 = vadd.f32 %v266, %v336
  %v338 = vpop.f32.mrb[0].mxu0
  %339 = vmatprep.mubr.bf16.mxu0 0
  %340 = vmatmul.mubr.bf16.gmra.mrb[0].mxu0 %v297
  %v341 = vpop.f32.mrb[0].mxu0
  %v342 = vadd.f32 %v266, %v341
  %v343 = vpop.f32.mrb[0].mxu0
  %v344 = vpop.f32.mrb[0].mxu0
  %v345 = vpop.f32.mrb[0].mxu0
  %346 = vdwg.mxu0
  %v347 = vmax.f32 %v334, 0.0
  %v348 = vmax.f32 %v337, 0.0
  %v349 = vmax.f32 %v342, 0.0
  %v350 = vpack.c.bf16 %v348, %v347
  %v351 = vpack.c.bf16 %v349, %v349
  %v353 = vsel %vm118, %v351, 0
  %355 = vmatprep.subr.bf16.mxu0 0
  %356 = vmatpush1.bf16.msra.mxu0 %v350
  %357 = vmatprep.subr.bf16.mxu0 0
  %358 = vmatpush1.bf16.msra.mxu0 %v353
  %359 = vmatprep.subr.bf16.mxu0 0
  %360 = vmatpush1.bf16.msra.mxu0 0
  %361 = vmatprep.subr.bf16.mxu0 0
  %362 = vmatpush1.bf16.msra.mxu0 0
  %363 = vmatprep.subr.bf16.mxu0 0
  %364 = vmatpush1.bf16.msra.mxu0 0
  %365 = vmatprep.subr.bf16.mxu0 0
  %366 = vmatpush1.bf16.msra.mxu0 0
  %367 = vmatprep.subr.bf16.mxu0 0
  %368 = vmatpush1.bf16.msra.mxu0 0
  %369 = vmatprep.subr.bf16.mxu0 0
  %370 = vmatpush1.bf16.msra.mxu0 0
  %371 = vmatprep.subr.bf16.mxu0 0
  %372 = vmatpush1.bf16.msra.mxu0 0
  %373 = vmatprep.subr.bf16.mxu0 0
  %374 = vmatpush1.bf16.msra.mxu0 0
  %375 = vmatprep.subr.bf16.mxu0 0
  %376 = vmatpush1.bf16.msra.mxu0 0
  %377 = vmatprep.subr.bf16.mxu0 0
  %378 = vmatpush1.bf16.msra.mxu0 0
  %379 = vmatprep.subr.bf16.mxu0 0
  %380 = vmatpush1.bf16.msra.mxu0 0
  %381 = vmatprep.subr.bf16.mxu0 0
  %382 = vmatpush1.bf16.msra.mxu0 0
  %383 = vmatprep.subr.bf16.mxu0 0
  %384 = vmatpush1.bf16.msra.mxu0 0
  %385 = vmatprep.subr.bf16.mxu0 0
  %386 = vmatpush1.bf16.msra.mxu0 0
  %387 = vmatprep.mubr.bf16.mxu0 0
  %388 = vmatmul.mubr.bf16.gmra.mrb[0].mxu0 %v101
  %v389 = vpop.f32.mrb[0].mxu0
  %v390 = vadd.f32 0.0, %v389
  %v391 = vpop.f32.mrb[0].mxu0
  %v392 = vpop.f32.mrb[0].mxu0
  %v393 = vadd.f32 0.0, %v392
  %v394 = vpop.f32.mrb[0].mxu0
  %395 = vmatprep.mubr.bf16.mxu0 0
  %396 = vmatmul.mubr.bf16.gmra.mrb[0].mxu0 %v104
  %v397 = vpop.f32.mrb[0].mxu0
  %v398 = vadd.f32 0.0, %v397
  %v399 = vpop.f32.mrb[0].mxu0
  %v400 = vpop.f32.mrb[0].mxu0
  %v401 = vadd.f32 0.0, %v400
  %v402 = vpop.f32.mrb[0].mxu0
  %403 = vmatprep.mubr.bf16.mxu0 0
  %404 = vmatmul.mubr.bf16.gmra.mrb[0].mxu0 %v107
  %v405 = vpop.f32.mrb[0].mxu0
  %v406 = vadd.f32 0.0, %v405
  %v407 = vpop.f32.mrb[0].mxu0
  %v408 = vpop.f32.mrb[0].mxu0
  %v409 = vadd.f32 0.0, %v408
  %v410 = vpop.f32.mrb[0].mxu0
  %411 = vmatprep.mubr.bf16.mxu0 0
  %412 = vmatmul.mubr.bf16.gmra.mrb[0].mxu0 %v110
  %v413 = vpop.f32.mrb[0].mxu0
  %v414 = vadd.f32 0.0, %v413
  %v415 = vpop.f32.mrb[0].mxu0
  %v416 = vpop.f32.mrb[0].mxu0
  %v417 = vadd.f32 0.0, %v416
  %v418 = vpop.f32.mrb[0].mxu0
  %419 = vmatprep.mubr.bf16.mxu0 0
  %420 = vmatmul.mubr.bf16.gmra.mrb[0].mxu0 %v113
  %v421 = vpop.f32.mrb[0].mxu0
  %v422 = vadd.f32 0.0, %v421
  %v423 = vpop.f32.mrb[0].mxu0
  %v424 = vpop.f32.mrb[0].mxu0
  %v425 = vadd.f32 0.0, %v424
  %v426 = vpop.f32.mrb[0].mxu0
  %427 = vmatprep.mubr.bf16.mxu0 0
  %428 = vmatmul.mubr.bf16.gmra.mrb[0].mxu0 %v116
  %v429 = vpop.f32.mrb[0].mxu0
  %v430 = vadd.f32 0.0, %v429
  %v431 = vpop.f32.mrb[0].mxu0
  %v432 = vpop.f32.mrb[0].mxu0
  %v433 = vadd.f32 0.0, %v432
  %v434 = vpop.f32.mrb[0].mxu0
  %435 = vdwg.mxu0
  %439 = vrot.lane.b32.xlu0 %v401, 32
  %v440 = vpop.permute.xlu0 %439
  %441 = vrot.lane.b32.xlu0 %v406, 32
  %v442 = vpop.permute.xlu0 %441
  %443 = vrot.lane.b32.xlu0 %v409, 32
  %v444 = vpop.permute.xlu0 %443
  %451 = vrot.lane.b32.xlu0 %v414, 64
  %v452 = vpop.permute.xlu0 %451
  %453 = vrot.lane.b32.xlu0 %v417, 64
  %v454 = vpop.permute.xlu0 %453
  %455 = vrot.lane.b32.xlu0 %v422, 64
  %v456 = vpop.permute.xlu0 %455
  %463 = vrot.lane.b32.xlu0 %v425, 96
  %v464 = vpop.permute.xlu0 %463
  %465 = vrot.lane.b32.xlu0 %v430, 96
  %v466 = vpop.permute.xlu0 %465
  %467 = vrot.lane.b32.xlu0 %v433, 96
  %v468 = vpop.permute.xlu0 %467
  %v472 = vsel %vm243, %v390, %v440
  %v473 = vsel %vm243, %v393, %v442
  %v474 = vsel %vm243, %v398, %v444
  %v475 = vsel %vm292, %v472, %v452
  %v476 = vsel %vm292, %v473, %v454
  %v477 = vsel %vm292, %v474, %v456
  %vm478 = vcmask 785408
  %v479 = vsel %vm478, %v475, %v464
  %v480 = vsel %vm478, %v476, %v466
  %v481 = vsel %vm478, %v477, %v468
  %v482 = vpack.c.bf16 %v480, %v479
  %v483 = vpack.c.bf16 %v481, %v481
  %v484 = vld [vmem:[%s5] sm:$0xf]
  %v485 = vld [vmem:[%s5 + $0x4] sm:$0xf]
  %v486 = vld [vmem:[%s5 + $0x8] sm:$0xf]
  %v487 = vld [vmem:[%s5 + $0xc] sm:$0xf]
  %v488 = vld [vmem:[%s5 + $0x10] sm:$0xf]
  %v489 = vld [vmem:[%s5 + $0x14] sm:$0xf]
  %v490 = vld [vmem:[%s5 + $0x18] sm:$0xf]
  %v491 = vld [vmem:[%s5 + $0x1c] sm:$0xf]
  %v492 = vld [vmem:[%s5 + $0x20] sm:$0xf]
  %v493 = vld [vmem:[%s5 + $0x24] sm:$0xf]
  %v494 = vld [vmem:[%s5 + $0x28] sm:$0xf]
  %v495 = vld [vmem:[%s5 + $0x2c] sm:$0xf]
  %v496 = vld [vmem:[%s5 + $0x30] sm:$0xf]
  %v497 = vld [vmem:[%s5 + $0x34] sm:$0xf]
  %v498 = vld [vmem:[%s5 + $0x38] sm:$0xf]
  %v499 = vld [vmem:[%s5 + $0x3c] sm:$0xf]
  %v500 = vld [vmem:[%s6] sm:$0x1]
  %v502 = vlaneseq
  %v503 = vshrl.u32 %v502, 7
  %v504 = vsub.s32 0, %v503
  %v505 = vrot.slane %v500, %v504
  %v523 = vunpack.c.l.b16 %v484
  %v524 = vunpack.c.l.b16 %v485
  %v525 = vunpack.c.l.b16 %v486
  %v526 = vunpack.c.l.b16 %v487
  %v527 = vunpack.c.l.b16 %v488
  %v528 = vunpack.c.l.b16 %v489
  %v529 = vunpack.c.l.b16 %v490
  %v530 = vunpack.c.l.b16 %v491
  %v531 = vunpack.c.l.b16 %v492
  %v532 = vunpack.c.l.b16 %v493
  %v533 = vunpack.c.l.b16 %v494
  %v534 = vunpack.c.l.b16 %v495
  %v535 = vunpack.c.l.b16 %v496
  %v536 = vunpack.c.l.b16 %v497
  %v537 = vunpack.c.l.b16 %v498
  %v538 = vunpack.c.l.b16 %v499
  %v539 = vpack.c.b16 %v524, %v523
  %v540 = vpack.c.b16 %v526, %v525
  %v541 = vpack.c.b16 %v528, %v527
  %v542 = vpack.c.b16 %v530, %v529
  %v543 = vpack.c.b16 %v532, %v531
  %v544 = vpack.c.b16 %v534, %v533
  %v545 = vpack.c.b16 %v536, %v535
  %v546 = vpack.c.b16 %v538, %v537
  %555 = vmatprep.subr.bf16.mxu0 0
  %556 = vmatpush1.bf16.msra.mxu0 %v539
  %557 = vmatprep.subr.bf16.mxu0 0
  %558 = vmatpush1.bf16.msra.mxu0 %v540
  %559 = vmatprep.subr.bf16.mxu0 0
  %560 = vmatpush1.bf16.msra.mxu0 %v541
  %561 = vmatprep.subr.bf16.mxu0 0
  %562 = vmatpush1.bf16.msra.mxu0 %v542
  %563 = vmatprep.subr.bf16.mxu0 0
  %564 = vmatpush1.bf16.msra.mxu0 %v543
  %565 = vmatprep.subr.bf16.mxu0 0
  %566 = vmatpush1.bf16.msra.mxu0 %v544
  %567 = vmatprep.subr.bf16.mxu0 0
  %568 = vmatpush1.bf16.msra.mxu0 %v545
  %569 = vmatprep.subr.bf16.mxu0 0
  %570 = vmatpush1.bf16.msra.mxu0 %v546
  %571 = vmatprep.subr.bf16.mxu0 0
  %572 = vmatpush1.bf16.msra.mxu0 0
  %573 = vmatprep.subr.bf16.mxu0 0
  %574 = vmatpush1.bf16.msra.mxu0 0
  %575 = vmatprep.subr.bf16.mxu0 0
  %576 = vmatpush1.bf16.msra.mxu0 0
  %577 = vmatprep.subr.bf16.mxu0 0
  %578 = vmatpush1.bf16.msra.mxu0 0
  %579 = vmatprep.subr.bf16.mxu0 0
  %580 = vmatpush1.bf16.msra.mxu0 0
  %581 = vmatprep.subr.bf16.mxu0 0
  %582 = vmatpush1.bf16.msra.mxu0 0
  %583 = vmatprep.subr.bf16.mxu0 0
  %584 = vmatpush1.bf16.msra.mxu0 0
  %585 = vmatprep.subr.bf16.mxu0 0
  %586 = vmatpush1.bf16.msra.mxu0 0
  %587 = vmatprep.mubr.bf16.mxu0 0
  %588 = vmatmul.mubr.bf16.gmra.mrb[0].mxu0 %v482
  %v589 = vpop.f32.mrb[0].mxu0
  %v590 = vadd.f32 %v505, %v589
  %v591 = vpop.f32.mrb[0].mxu0
  %v592 = vpop.f32.mrb[0].mxu0
  %v593 = vadd.f32 %v505, %v592
  %v594 = vpop.f32.mrb[0].mxu0
  %595 = vmatprep.mubr.bf16.mxu0 0
  %596 = vmatmul.mubr.bf16.gmra.mrb[0].mxu0 %v483
  %v597 = vpop.f32.mrb[0].mxu0
  %v598 = vadd.f32 %v505, %v597
  %v599 = vpop.f32.mrb[0].mxu0
  %v600 = vpop.f32.mrb[0].mxu0
  %v601 = vpop.f32.mrb[0].mxu0
  %602 = vdwg.mxu0
  %v603 = vmax.f32 %v590, 0.0
  %v604 = vmax.f32 %v593, 0.0
  %v605 = vmax.f32 %v598, 0.0
  %v606 = vld [vmem:[%s2] sm:$0xf]
  %v607 = vpack.c.bf16 %v604, %v603
  %v608 = vpack.c.bf16 %v605, %v605
  %v610 = vsel %vm99, %v606, 0
  %v613 = vsel %vm118, %v608, 0
  %615 = vmatprep.subr.bf16.mxu0 0
  %616 = vmatpush1.bf16.msra.mxu0 %v607
  %617 = vmatprep.subr.bf16.mxu0 0
  %618 = vmatpush1.bf16.msra.mxu0 %v613
  %619 = vmatprep.subr.bf16.mxu0 0
  %620 = vmatpush1.bf16.msra.mxu0 0
  %621 = vmatprep.subr.bf16.mxu0 0
  %622 = vmatpush1.bf16.msra.mxu0 0
  %623 = vmatprep.subr.bf16.mxu0 0
  %624 = vmatpush1.bf16.msra.mxu0 0
  %625 = vmatprep.subr.bf16.mxu0 0
  %626 = vmatpush1.bf16.msra.mxu0 0
  %627 = vmatprep.subr.bf16.mxu0 0
  %628 = vmatpush1.bf16.msra.mxu0 0
  %629 = vmatprep.subr.bf16.mxu0 0
  %630 = vmatpush1.bf16.msra.mxu0 0
  %631 = vmatprep.subr.bf16.mxu0 0
  %632 = vmatpush1.bf16.msra.mxu0 0
  %633 = vmatprep.subr.bf16.mxu0 0
  %634 = vmatpush1.bf16.msra.mxu0 0
  %635 = vmatprep.subr.bf16.mxu0 0
  %636 = vmatpush1.bf16.msra.mxu0 0
  %637 = vmatprep.subr.bf16.mxu0 0
  %638 = vmatpush1.bf16.msra.mxu0 0
  %639 = vmatprep.subr.bf16.mxu0 0
  %640 = vmatpush1.bf16.msra.mxu0 0
  %641 = vmatprep.subr.bf16.mxu0 0
  %642 = vmatpush1.bf16.msra.mxu0 0
  %643 = vmatprep.subr.bf16.mxu0 0
  %644 = vmatpush1.bf16.msra.mxu0 0
  %645 = vmatprep.subr.bf16.mxu0 0
  %646 = vmatpush1.bf16.msra.mxu0 0
  %647 = vmatprep.mubr.bf16.mxu0 0
  %648 = vmatmul.mubr.bf16.gmra.mrb[0].mxu0 %v610
  %v649 = vpop.f32.mrb[0].mxu0
  %v650 = vadd.f32 0.0, %v649
  %v651 = vpop.f32.mrb[0].mxu0
  %v652 = vpop.f32.mrb[0].mxu0
  %v653 = vpop.f32.mrb[0].mxu0
  %654 = vdwg.mxu0
  %v655 = vpack.c.bf16 %v650, %v650
  %v656 = vld [vmem:[%s7] sm:$0xf]
  %v657 = vld [vmem:[%s7 + $0x4] sm:$0xf]
  %v658 = vld [vmem:[%s7 + $0x8] sm:$0xf]
  %v659 = vld [vmem:[%s7 + $0xc] sm:$0xf]
  %v660 = vld [vmem:[%s8] sm:$0x1]
  %v662 = vlaneseq
  %v663 = vshrl.u32 %v662, 7
  %v664 = vsub.s32 0, %v663
  %v665 = vrot.slane %v660, %v664
  %v671 = vunpack.c.l.b16 %v656
  %v672 = vunpack.c.l.b16 %v657
  %v673 = vunpack.c.l.b16 %v658
  %v674 = vunpack.c.l.b16 %v659
  %v675 = vpack.c.b16 %v672, %v671
  %v676 = vpack.c.b16 %v674, %v673
  %v680 = vsel %vm243, %v655, 0
  %682 = vmatprep.subr.bf16.mxu0 0
  %683 = vmatpush1.bf16.msra.mxu0 %v675
  %684 = vmatprep.subr.bf16.mxu0 0
  %685 = vmatpush1.bf16.msra.mxu0 %v676
  %686 = vmatprep.subr.bf16.mxu0 0
  %687 = vmatpush1.bf16.msra.mxu0 0
  %688 = vmatprep.subr.bf16.mxu0 0
  %689 = vmatpush1.bf16.msra.mxu0 0
  %690 = vmatprep.subr.bf16.mxu0 0
  %691 = vmatpush1.bf16.msra.mxu0 0
  %692 = vmatprep.subr.bf16.mxu0 0
  %693 = vmatpush1.bf16.msra.mxu0 0
  %694 = vmatprep.subr.bf16.mxu0 0
  %695 = vmatpush1.bf16.msra.mxu0 0
  %696 = vmatprep.subr.bf16.mxu0 0
  %697 = vmatpush1.bf16.msra.mxu0 0
  %698 = vmatprep.subr.bf16.mxu0 0
  %699 = vmatpush1.bf16.msra.mxu0 0
  %700 = vmatprep.subr.bf16.mxu0 0
  %701 = vmatpush1.bf16.msra.mxu0 0
  %702 = vmatprep.subr.bf16.mxu0 0
  %703 = vmatpush1.bf16.msra.mxu0 0
  %704 = vmatprep.subr.bf16.mxu0 0
  %705 = vmatpush1.bf16.msra.mxu0 0
  %706 = vmatprep.subr.bf16.mxu0 0
  %707 = vmatpush1.bf16.msra.mxu0 0
  %708 = vmatprep.subr.bf16.mxu0 0
  %709 = vmatpush1.bf16.msra.mxu0 0
  %710 = vmatprep.subr.bf16.mxu0 0
  %711 = vmatpush1.bf16.msra.mxu0 0
  %712 = vmatprep.subr.bf16.mxu0 0
  %713 = vmatpush1.bf16.msra.mxu0 0
  %714 = vmatprep.mubr.bf16.mxu0 0
  %715 = vmatmul.mubr.bf16.gmra.mrb[0].mxu0 %v680
  %v716 = vpop.f32.mrb[0].mxu0
  %v717 = vadd.f32 %v665, %v716
  %v718 = vpop.f32.mrb[0].mxu0
  %v719 = vpop.f32.mrb[0].mxu0
  %v720 = vpop.f32.mrb[0].mxu0
  %721 = vdwg.mxu0
  %v722 = vmax.f32 %v717, 0.0
  %v723 = vpack.c.bf16 %v722, %v722
  %v724 = vld [vmem:[%s9] sm:$0xf]
  %v725 = vld [vmem:[%s9 + $0x4] sm:$0xf]
  %v726 = vld [vmem:[%s9 + $0x8] sm:$0xf]
  %v727 = vld [vmem:[%s9 + $0xc] sm:$0xf]
  %v728 = vld [vmem:[%s10] sm:$0x1]
  %v730 = vlaneseq
  %v731 = vshrl.u32 %v730, 7
  %v732 = vsub.s32 0, %v731
  %v733 = vrot.slane %v728, %v732
  %v739 = vunpack.c.l.b16 %v724
  %v740 = vunpack.c.l.b16 %v725
  %v741 = vunpack.c.l.b16 %v726
  %v742 = vunpack.c.l.b16 %v727
  %v743 = vpack.c.b16 %v740, %v739
  %v744 = vpack.c.b16 %v742, %v741
  %v748 = vsel %vm243, %v723, 0
  %750 = vmatprep.subr.bf16.mxu0 0
  %751 = vmatpush1.bf16.msra.mxu0 %v743
  %752 = vmatprep.subr.bf16.mxu0 0
  %753 = vmatpush1.bf16.msra.mxu0 %v744
  %754 = vmatprep.subr.bf16.mxu0 0
  %755 = vmatpush1.bf16.msra.mxu0 0
  %756 = vmatprep.subr.bf16.mxu0 0
  %757 = vmatpush1.bf16.msra.mxu0 0
  %758 = vmatprep.subr.bf16.mxu0 0
  %759 = vmatpush1.bf16.msra.mxu0 0
  %760 = vmatprep.subr.bf16.mxu0 0
  %761 = vmatpush1.bf16.msra.mxu0 0
  %762 = vmatprep.subr.bf16.mxu0 0
  %763 = vmatpush1.bf16.msra.mxu0 0
  %764 = vmatprep.subr.bf16.mxu0 0
  %765 = vmatpush1.bf16.msra.mxu0 0
  %766 = vmatprep.subr.bf16.mxu0 0
  %767 = vmatpush1.bf16.msra.mxu0 0
  %768 = vmatprep.subr.bf16.mxu0 0
  %769 = vmatpush1.bf16.msra.mxu0 0
  %770 = vmatprep.subr.bf16.mxu0 0
  %771 = vmatpush1.bf16.msra.mxu0 0
  %772 = vmatprep.subr.bf16.mxu0 0
  %773 = vmatpush1.bf16.msra.mxu0 0
  %774 = vmatprep.subr.bf16.mxu0 0
  %775 = vmatpush1.bf16.msra.mxu0 0
  %776 = vmatprep.subr.bf16.mxu0 0
  %777 = vmatpush1.bf16.msra.mxu0 0
  %778 = vmatprep.subr.bf16.mxu0 0
  %779 = vmatpush1.bf16.msra.mxu0 0
  %780 = vmatprep.subr.bf16.mxu0 0
  %781 = vmatpush1.bf16.msra.mxu0 0
  %782 = vmatprep.mubr.bf16.mxu0 0
  %783 = vmatmul.mubr.bf16.gmra.mrb[0].mxu0 %v748
  %v784 = vpop.f32.mrb[0].mxu0
  %v785 = vadd.f32 %v733, %v784
  %v786 = vpop.f32.mrb[0].mxu0
  %v787 = vpop.f32.mrb[0].mxu0
  %v788 = vpop.f32.mrb[0].mxu0
  %789 = vdwg.mxu0
  %v790 = vmax.f32 %v785, 0.0
  %v791 = vpack.c.bf16 %v790, %v790
  %v792 = vld [vmem:[%s11] sm:$0xf]
  %v793 = vld [vmem:[%s11 + $0x4] sm:$0xf]
  %v794 = vld [vmem:[%s12] sm:$0x1]
  %v796 = vlaneseq
  %v797 = vshrl.u32 %v796, 7
  %v798 = vsub.s32 0, %v797
  %v799 = vrot.slane %v794, %v798
  %v803 = vunpack.c.l.b16 %v792
  %v804 = vunpack.c.l.b16 %v793
  %v805 = vpack.c.b16 %v804, %v803
  %v808 = vsel %vm239, %v791, 0
  %810 = vmatprep.subr.bf16.mxu0 0
  %811 = vmatpush1.bf16.msra.mxu0 %v805
  %812 = vmatprep.subr.bf16.mxu0 0
  %813 = vmatpush1.bf16.msra.mxu0 0
  %814 = vmatprep.subr.bf16.mxu0 0
  %815 = vmatpush1.bf16.msra.mxu0 0
  %816 = vmatprep.subr.bf16.mxu0 0
  %817 = vmatpush1.bf16.msra.mxu0 0
  %818 = vmatprep.subr.bf16.mxu0 0
  %819 = vmatpush1.bf16.msra.mxu0 0
  %820 = vmatprep.subr.bf16.mxu0 0
  %821 = vmatpush1.bf16.msra.mxu0 0
  %822 = vmatprep.subr.bf16.mxu0 0
  %823 = vmatpush1.bf16.msra.mxu0 0
  %824 = vmatprep.subr.bf16.mxu0 0
  %825 = vmatpush1.bf16.msra.mxu0 0
  %826 = vmatprep.subr.bf16.mxu0 0
  %827 = vmatpush1.bf16.msra.mxu0 0
  %828 = vmatprep.subr.bf16.mxu0 0
  %829 = vmatpush1.bf16.msra.mxu0 0
  %830 = vmatprep.subr.bf16.mxu0 0
  %831 = vmatpush1.bf16.msra.mxu0 0
  %832 = vmatprep.subr.bf16.mxu0 0
  %833 = vmatpush1.bf16.msra.mxu0 0
  %834 = vmatprep.subr.bf16.mxu0 0
  %835 = vmatpush1.bf16.msra.mxu0 0
  %836 = vmatprep.subr.bf16.mxu0 0
  %837 = vmatpush1.bf16.msra.mxu0 0
  %838 = vmatprep.subr.bf16.mxu0 0
  %839 = vmatpush1.bf16.msra.mxu0 0
  %840 = vmatprep.subr.bf16.mxu0 0
  %841 = vmatpush1.bf16.msra.mxu0 0
  %842 = vmatprep.mubr.bf16.mxu0 0
  %843 = vmatmul.mubr.bf16.gmra.mrb[0].mxu0 %v808
  %v844 = vpop.f32.mrb[0].mxu0
  %v845 = vadd.f32 %v799, %v844
  %v846 = vpop.f32.mrb[0].mxu0
  %v847 = vpop.f32.mrb[0].mxu0
  %v848 = vpop.f32.mrb[0].mxu0
  %849 = vdwg.mxu0
  %850 = vmax.xlane.f32.xlu0 %v845
  %v851 = vpop.xlane.xlu0 %850
  %v852 = vsub.f32 %v845, %v851
  %v853 = vmul.f32 %v852, 1.442695
  %v854 = vpow.pop %v853
  %855 = vadd.xlane.f32.xlu0 %v854
  %v856 = vpop.xlane.xlu0 %855
  %v857 = vlog2.pop %v856
  %v858 = vmul.f32 %v857, 0.6931472
  %v859 = vsub.f32 %v852, %v858
  %860 = vst [vmem:[%s13] sm:$0xff] %v859
  // Predicated region
  $region54: #{rgcn_forward.1} parent=0 // pred_check
    _
  $region55: #{rgcn_forward.1} parent=0 // pred_check_branch
    %862 = sbr.rel (0) target = $region57
  $region56: #{rgcn_forward.1} parent=0 // pred_region
    _
  $region57: #{rgcn_forward.1} parent=0 // pred_fallthru
    _
  // Predicated region
  $region58: #{rgcn_forward.1} parent=0 // pred_check
    _
  $region59: #{rgcn_forward.1} parent=0 // pred_check_branch
    %864 = sbr.rel (0) target = $region61
  $region60: #{rgcn_forward.1} parent=0 // pred_region
    _
  $region61: #{rgcn_forward.1} parent=0 // pred_fallthru
    _

</llo_original>
